<compile_context>
chip_gen: v5e
topology: v5e:2x2
jax: 0.10.0
libtpu: 0.0.40
codegen_flags: <defaults>
</compile_context>

<pallas_src>
import jax
import jax.numpy as jnp
from jax.experimental import pallas as pl
from jax.experimental.pallas import tpu as pltpu


def _gather_kernel(ids_ref, row_ref, out_ref):
    # ids_ref: (B,) int32 in SMEM (scalar prefetch) -- consumed by the
    #          index_maps; not needed in the body.
    # row_ref: (1, 1, D) the embedding-table row selected for this batch index.
    # out_ref: (1, 1, D) output slot for this batch index.
    del ids_ref
    out_ref[...] = row_ref[...]


def gpt_embed_forward(x, table):
    """x: (B, S) integer tokens; table: (V, D) float32. Returns (B, D)."""
    b, _ = x.shape
    v, d = table.shape

    # Lambda(x.long()) + "[:, -1]" glue: cast + pick the last token per row.
    # Clamp is a safety net only (module guarantees ids < num_embeddings).
    ids = jnp.clip(x[:, -1].astype(jnp.int32), 0, v - 1)          # (B,)

    # Present (V, 1, D) / (B, 1, D) so each BlockSpec's last two dims equal the
    # full array dims; the data-dependent row index lives on the leading axis.
    table3 = table.reshape(v, 1, d)

    out3 = pl.pallas_call(
        _gather_kernel,
        out_shape=jax.ShapeDtypeStruct((b, 1, d), table.dtype),
        grid_spec=pltpu.PrefetchScalarGridSpec(
            num_scalar_prefetch=1,                 # ids -> SMEM before the grid
            grid=(b,),                             # one lookup per grid step
            in_specs=[
                # Data-dependent gather: DMA only table row ids[i] per step.
                pl.BlockSpec((1, 1, d), lambda i, ids_ref: (ids_ref[i], 0, 0)),
            ],
            out_specs=pl.BlockSpec((1, 1, d), lambda i, ids_ref: (i, 0, 0)),
        ),
        compiler_params=pltpu.CompilerParams(
            # Lookups are independent across batch rows -> shard over the two
            # TensorCores on v7x; harmless on single-TC v5e/v6e.
            dimension_semantics=("parallel",),
        ),
    )(ids, table3)

    return out3.reshape(b, d)


if __name__ == "__main__":
    key = jax.random.PRNGKey(0)
    k_tok, k_emb = jax.random.split(key)

    B, S = 2, 8          # batch, sequence length
    V_MAX = 16           # token ids drawn from [0, 16)
    D = 32               # embedding size ("hidden")

    # Inputs: integer tokens, like the PyTorch module's `inputs` tensor.
    x = jax.random.randint(k_tok, (B, S), minval=0, maxval=V_MAX, dtype=jnp.int32)

    # num_embeddings = int(inputs.max() + 1), as in GPTEmbed.__init__
    num_embeddings = int(jnp.max(x)) + 1

    # nn.Embedding default init: N(0, 1) — deterministic synthetic weights.
    table = jax.random.normal(k_emb, (num_embeddings, D), dtype=jnp.float32)

    out = gpt_embed_forward(x, table)
    out = jax.block_until_ready(out)

    # Reference check (plain JAX gather of the last token's embedding).
    ref = table[x[:, -1]]
    assert out.shape == (B, D)
    assert jnp.allclose(out, ref, atol=1e-5, rtol=1e-5)

    print("KERNEL_OK")
</pallas_src>

<mosaic_0001>
module attributes {stable_mosaic.version = 11 : i64} {
  func.func @_gather_kernel(%arg0: i32, %arg1: memref<2xi32, #tpu.memory_space<smem>>, %arg2: memref<1x1x32xf32, #tpu.memory_space<vmem>>, %arg3: memref<1x1x32xf32, #tpu.memory_space<vmem>>) attributes {dimension_semantics = [#tpu.dimension_semantics<parallel>], iteration_bounds = array<i64: 2>, scalar_prefetch = 1 : i64, scratch_operands = 0 : i64, tpu.core_type = #tpu.core_type<tc>, window_params = [{transform_indices = @transform_0, window_bounds = array<i64: 1, 1, 32>}, {transform_indices = @transform_1, window_bounds = array<i64: 1, 1, 32>}]} {
    %c0 = arith.constant 0 : index
    %c0_0 = arith.constant 0 : index
    %c0_1 = arith.constant 0 : index
    %0 = vector.load %arg2[%c0, %c0_0, %c0_1] : memref<1x1x32xf32, #tpu.memory_space<vmem>>, vector<1x1x32xf32>
    %c0_2 = arith.constant 0 : index
    %c0_3 = arith.constant 0 : index
    %c0_4 = arith.constant 0 : index
    %1 = vector.load %arg3[%c0_2, %c0_3, %c0_4] : memref<1x1x32xf32, #tpu.memory_space<vmem>>, vector<1x1x32xf32>
    tpu.vector_store %arg3[%c0_2, %c0_3, %c0_4], %0 {strides = array<i32>} : memref<1x1x32xf32, #tpu.memory_space<vmem>>, vector<1x1x32xf32>,
    return
  }
  func.func @transform_0(%arg0: i32, %arg1: memref<2xi32, #tpu.memory_space<smem>>) -> (i32, i32, i32) {
    %0 = arith.index_cast %arg0 : i32 to index
    %1 = memref.load %arg1[%0] : memref<2xi32, #tpu.memory_space<smem>>
    %c0_i32 = arith.constant 0 : i32
    %c0_i32_0 = arith.constant 0 : i32
    %c0_i32_1 = arith.constant 0 : i32
    return %1, %c0_i32, %c0_i32_0 : i32, i32, i32
  }
  func.func @transform_1(%arg0: i32, %arg1: memref<2xi32, #tpu.memory_space<smem>>) -> (i32, i32, i32) {
    %c0_i32 = arith.constant 0 : i32
    %c0_i32_0 = arith.constant 0 : i32
    %c0_i32_1 = arith.constant 0 : i32
    return %arg0, %c0_i32, %c0_i32_0 : i32, i32, i32
  }
}

</mosaic_0001>

<llo_original>
// kernel: tpu_custom_call.1
$region0: #{tpu_custom_call.1}
  #allocation0 [shape = 'u32[]', space=smem, size = 0x4, offset = 0x4, fixed_abs, tag = 'smem constant byte address 0x4 - core index']
  #allocation1 [shape = 'u32[72,128]{1,0:T(1,128)}', space=vmem, size = 0x9000, scoped, tag = 'internal scratch']
  #allocation2 [shape = 's32[1]{0}', space=sflag, size = 0x4, scoped, tag = 'scoped memory for tpu_custom_call.1']
  #allocation3 [shape = 'u8[512]{0}', space=smem, size = 0x200, scoped, tag = 'prefetched SMEM operand 0']
  %s0 = inlined_call_operand.hbm [shape: s32[2], index: 0, kind: input, shape index: {}]
  %s1 = inlined_call_operand.hbm [shape: f32[16,1,32], index: 1, kind: input, shape index: {}]
  %s2 = inlined_call_operand.hbm [shape: f32[2,1,32], index: 2, kind: output, shape index: {}]
  %s3 = sld [smem:[#allocation0]]
  $region41: #{tpu_custom_call.1} parent=0
    _
  %s5 = ssub.s32 1, %s3
  %s6 = scalar_select 0, %s5, %s3
  %s8 = sshll.u32 %s0, 4
  %s9 = int_to_ptr.hbm [resolvable:$true] %s8
  %11 = dma.hbm_to_smem %s9, 16, [#allocation3], [#allocation2]
  %13 = dma.done [#allocation2], 16
  %14 = sfence
  $region1: #{tpu_custom_call.1} parent=0
    #allocation4 [shape = 'u8[1024]{0}', space=vmem, size = 0x400, scoped, tag = 'input window, operand 1']
    #allocation5 [shape = 's32[2]{0}', space=sflag, size = 0x8, scoped, tag = 'scoped memory for tpu_custom_call.1']
    #allocation6 [shape = 's32[2]{0}', space=sflag, size = 0x8, scoped, tag = 'scoped memory for tpu_custom_call.1']
    #allocation7 [shape = 'u8[1024]{0}', space=vmem, size = 0x400, scoped, tag = 'output window, operand 0']
    %15 = vsyncpa [#allocation5], 0
    %s16 = scalar_lea.sflag [#allocation5], 1
    %17 = vsyncpa %s16, 0
    %18 = vsyncpa [#allocation6], 0
    %s19 = scalar_lea.sflag [#allocation6], 1
    %20 = vsyncpa %s19, 0
    loop: start=0, step=1, limit=4
    $region2: #{tpu_custom_call.1} parent=1 // loop_pre_header
      _
    $region3: #{tpu_custom_call.1} parent=1 // loop_header
      %s22 = sphi 0, %s26
      %p23 = scmp.ge.s32.totalorder %s22, 4
      %s34 = sphi 0, %s36
      %s37 = sphi 0, %s34
      %s38 = sphi 0, %s37
      %s54 = sphi 0, %s38
      %s60 = sphi 0, %s62
      %s63 = sphi 0, %s60
      %s64 = sphi 0, %s63
      %s80 = sphi 0, %s64
    $region4: #{tpu_custom_call.1} parent=1 // loop_header_branch
      %25 = sbr.rel (%p23) target = $region8
    $region5: #{tpu_custom_call.1} parent=1 // loop_body
      %s27 = ssub.s32 %s22, 1
      %s28 = ssub.s32 %s22, 2
      %s29 = sadd.s32 %s22, 1
      %s30 = sld [smem:[#allocation3 + %s22]]
      %s31 = sld [smem:[#allocation3 + %s29]]
      %s32 = ssub.s32 %s30, %s31
      %p33 = scmp.eq.s32.totalorder %s32, 0
      %s35 = sadd.s32 %s34, 1
      %s36 = scalar_select %p33, %s34, %s35
      %p39 = pneg %p33
      %p40 = scmp.eq.s32.totalorder %s22, 1
      %p41 = por %p39, %p40
      %p42 = scmp.ne.s32.totalorder %s34, %s37
      %p43 = scmp.eq.s32.totalorder %s22, 0
      %p44 = por %p42, %p43
      %p45 = scmp.ne.s32.totalorder %s34, %s37
      %p46 = scmp.eq.s32.totalorder %s27, 1
      %p47 = por %p45, %p46
      %p48 = scmp.ne.s32.totalorder %s37, %s38
      %p49 = scmp.eq.s32.totalorder %s27, 0
      %p50 = por %p48, %p49
      %p51 = scmp.ne.s32.totalorder %s37, %s38
      %p52 = scmp.eq.s32.totalorder %s28, 1
      %p53 = por %p51, %p52
      %p55 = scmp.ne.s32.totalorder %s38, %s54
      %p56 = scmp.eq.s32.totalorder %s28, 0
      %p57 = por %p55, %p56
      %s58 = ssub.s32 %s22, %s29
      %p59 = scmp.eq.s32.totalorder %s58, 0
      %s61 = sadd.s32 %s60, 1
      %s62 = scalar_select %p59, %s60, %s61
      %p65 = pneg %p59
      %p66 = scmp.eq.s32.totalorder %s22, 1
      %p67 = por %p65, %p66
      %p68 = scmp.ne.s32.totalorder %s60, %s63
      %p69 = scmp.eq.s32.totalorder %s22, 0
      %p70 = por %p68, %p69
      %p71 = scmp.ne.s32.totalorder %s60, %s63
      %p72 = scmp.eq.s32.totalorder %s27, 1
      %p73 = por %p71, %p72
      %p74 = scmp.ne.s32.totalorder %s63, %s64
      %p75 = scmp.eq.s32.totalorder %s27, 0
      %p76 = por %p74, %p75
      %p77 = scmp.ne.s32.totalorder %s63, %s64
      %p78 = scmp.eq.s32.totalorder %s28, 1
      %p79 = por %p77, %p78
      %p81 = scmp.ne.s32.totalorder %s64, %s80
      %p82 = scmp.eq.s32.totalorder %s28, 0
      %p83 = por %p81, %p82
      %p84 = scmp.le.s32.totalorder 1, %s22
      %p85 = scmp.lt.s32.totalorder %s22, 3
      %p86 = pnand %p84, %p85
      %p87 = pneg %p86
      // Predicated region
      $region9: #{tpu_custom_call.1} parent=5 // pred_check
        _
      $region10: #{tpu_custom_call.1} parent=5 // pred_check_branch
        %89 = sbr.rel (%p86) target = $region12
      $region11: #{tpu_custom_call.1} parent=5 // pred_region
        %s90 = ssub.s32 %s22, 1
      $region12: #{tpu_custom_call.1} parent=5 // pred_fallthru
        _
      %p91 = scmp.lt.s32.totalorder %s22, 2
      // Predicated region
      $region13: #{tpu_custom_call.1} parent=5 // pred_check
        %p92 = pneg %p91
      $region14: #{tpu_custom_call.1} parent=5 // pred_check_branch
        %94 = sbr.rel (%p92) target = $region16
      $region15: #{tpu_custom_call.1} parent=5 // pred_region
        // Predicated region
        $region17: #{tpu_custom_call.1} parent=15 // pred_check
          %p95 = pneg %p44
        $region18: #{tpu_custom_call.1} parent=15 // pred_check_branch
          %97 = sbr.rel (%p95) target = $region20
        $region19: #{tpu_custom_call.1} parent=15 // pred_region
          %s98 = sand.u32 %s34, 1
          %s99 = scalar_lea.sflag [#allocation5], %s98
          %s100 = sand.u32 %s34, 1
          %s101 = scalar_lea.vmem [#allocation4], %s100
          %s102 = sld [smem:[#allocation3 + %s22]]
          %104 = vsyncadd %s99, 0
          %s105 = scalar_lea.hbm %s1, %s102
          %s107 = sshll.u32 %s105, 4
          %s108 = int_to_ptr.hbm [resolvable:$true] %s107
          %s109 = sshll.u32 %s101, 4
          %s110 = int_to_ptr.vmem [resolvable:$true] %s109
          %112 = dma.hbm_to_vmem [thread:$0]  %s108, 16, %s110, %s99
        $region20: #{tpu_custom_call.1} parent=15 // pred_fallthru
          _
      $region16: #{tpu_custom_call.1} parent=5 // pred_fallthru
        _
      %p113 = scmp.le.s32.totalorder 1, %s22
      %p114 = scmp.lt.s32.totalorder %s22, 3
      %p115 = pnand %p113, %p114
      %p116 = pneg %p115
      // Predicated region
      $region21: #{tpu_custom_call.1} parent=5 // pred_check
        _
      $region22: #{tpu_custom_call.1} parent=5 // pred_check_branch
        %118 = sbr.rel (%p115) target = $region24
      $region23: #{tpu_custom_call.1} parent=5 // pred_region
        %s119 = ssub.s32 %s22, 1
        %s120 = sand.u32 %s37, 1
        %s121 = scalar_lea.sflag [#allocation5], %s120
        %s122 = sand.u32 %s37, 1
        %s123 = scalar_lea.vmem [#allocation4], %s122
        // Predicated region
        $region25: #{tpu_custom_call.1} parent=23 // pred_check
          %p124 = pneg %p50
        $region26: #{tpu_custom_call.1} parent=23 // pred_check_branch
          %126 = sbr.rel (%p124) target = $region28
        $region27: #{tpu_custom_call.1} parent=23 // pred_region
          %128 = dma.done %s121, 16
        $region28: #{tpu_custom_call.1} parent=23 // pred_fallthru
          _
        %s129 = sand.u32 %s37, 1
        %s130 = scalar_lea.sflag [#allocation5], %s129
        %s131 = sand.u32 %s37, 1
        %s132 = scalar_lea.vmem [#allocation4], %s131
        %p133 = pneg %p50
        %p134 = pneg %p47
        %p135 = pneg %p76
        %p136 = pneg %p73
        %s137 = sand.u32 %s63, 1
        %s138 = scalar_lea.sflag [#allocation6], %s137
        %s139 = sand.u32 %s63, 1
        %s140 = scalar_lea.vmem [#allocation7], %s139
        %s141 = sld [smem:[#allocation3 + %s27]]
        %v142 = vld [vmem:[%s123] sm:$0x1]
        %vm143 = vcmask 253952
        %144 = vst.msk [vmem:[%s140] sm:$0x1] %vm143, %v142
        %s145 = sand.u32 %s63, 1
        %s146 = scalar_lea.sflag [#allocation6], %s145
        %s147 = sand.u32 %s63, 1
        %s148 = scalar_lea.vmem [#allocation7], %s147
        // Predicated region
        $region29: #{tpu_custom_call.1} parent=23 // pred_check
          %p149 = pneg %p73
        $region30: #{tpu_custom_call.1} parent=23 // pred_check_branch
          %151 = sbr.rel (%p149) target = $region32
        $region31: #{tpu_custom_call.1} parent=23 // pred_region
          %153 = vsyncadd %s146, 0
          %s154 = scalar_lea.hbm %s2, %s27
          %s156 = sshll.u32 %s148, 4
          %s157 = int_to_ptr.vmem [resolvable:$true] %s156
          %s158 = sshll.u32 %s154, 4
          %s159 = int_to_ptr.hbm [resolvable:$true] %s158
          %161 = dma.vmem_to_hbm [thread:$0]  %s157, 16, %s159, %s146
        $region32: #{tpu_custom_call.1} parent=23 // pred_fallthru
          _
      $region24: #{tpu_custom_call.1} parent=5 // pred_fallthru
        _
      %p162 = scmp.le.s32.totalorder 2, %s22
      // Predicated region
      $region33: #{tpu_custom_call.1} parent=5 // pred_check
        %p163 = pneg %p162
      $region34: #{tpu_custom_call.1} parent=5 // pred_check_branch
        %165 = sbr.rel (%p163) target = $region36
      $region35: #{tpu_custom_call.1} parent=5 // pred_region
        %s166 = ssub.s32 %s22, 2
        // Predicated region
        $region37: #{tpu_custom_call.1} parent=35 // pred_check
          %p167 = pneg %p79
        $region38: #{tpu_custom_call.1} parent=35 // pred_check_branch
          %169 = sbr.rel (%p167) target = $region40
        $region39: #{tpu_custom_call.1} parent=35 // pred_region
          %s170 = sand.u32 %s64, 1
          %s171 = scalar_lea.sflag [#allocation6], %s170
          %s172 = sand.u32 %s64, 1
          %s173 = scalar_lea.vmem [#allocation7], %s172
          %175 = dma.done %s171, 16
        $region40: #{tpu_custom_call.1} parent=35 // pred_fallthru
          _
      $region36: #{tpu_custom_call.1} parent=5 // pred_fallthru
        _
    $region6: #{tpu_custom_call.1} parent=1 // loop_footer
      %s26 = sadd.s32 1, %s22
    $region7: #{tpu_custom_call.1} parent=1 // loop_footer_branch
      %21 = sbr.rel target = $region3
    $region8: #{tpu_custom_call.1} parent=1 // loop_exit
      _
    %176 = vsyncpa [#allocation5], 1
    %s177 = scalar_lea.sflag [#allocation5], 1
    %178 = vsyncpa %s177, 1
    %179 = vsyncpa [#allocation6], 1
    %s180 = scalar_lea.sflag [#allocation6], 1
    %181 = vsyncpa %s180, 1

</llo_original>
